<compile_context>
chip_gen: v7x
topology: tpu7x:2x2x1
jax: 0.10.0
libtpu: 0.0.40
codegen_flags: <defaults>
</compile_context>

<pallas_src>
import functools

import jax
import jax.numpy as jnp
from jax.experimental import pallas as pl
from jax.experimental.pallas import tpu as pltpu


def _splat_kernel(x_ref, w1_ref, b1_ref, w2_ref, b2_ref, o_ref, *, radix, channels, hw):
    """x_ref: (NB, radix, C, HW); o_ref: (NB, C, HW); weights pre-folded/permuted."""
    R, C = radix, channels
    inv_hw = 1.0 / float(hw)

    def split(r):
        # (NB, 1, C, HW) static slice, then a value-level squeeze (layout no-op:
        # the squeezed dim is not a lane/sublane dim).
        return jnp.squeeze(x_ref[:, r:r + 1, :, :], axis=1)           # (NB, C, HW)

    # --- 1) global average pool of the radix-split sum: gap[nb, c]  (f32, lane reduce)
    gap = jnp.sum(split(0).astype(jnp.float32), axis=-1)
    for r in range(1, R):
        gap = gap + jnp.sum(split(r).astype(jnp.float32), axis=-1)
    gap = gap * inv_hw                                                # (NB, C)

    # --- 2) fc1 (grouped 1x1 conv, BN folded) + ReLU : (NB, C) @ (C, IC)
    w1 = w1_ref[...]
    h = jnp.dot(gap.astype(w1.dtype), w1, preferred_element_type=jnp.float32)
    h = jnp.maximum(h + b1_ref[...], 0.0)                             # (NB, IC)

    # --- 3) fc2 (grouped 1x1 conv), columns pre-permuted radix-major : (NB, R*C)
    w2 = w2_ref[...]
    a = jnp.dot(h.astype(w2.dtype), w2, preferred_element_type=jnp.float32) + b2_ref[...]

    # --- 4) rSoftMax over radix (sigmoid when radix == 1); per-radix (NB, C) scales
    xdt = x_ref.dtype
    if R > 1:
        logits = [a[:, r * C:(r + 1) * C] for r in range(R)]          # (NB, C) each
        m = logits[0]
        for r in range(1, R):
            m = jnp.maximum(m, logits[r])
        exps = [jnp.exp(l - m) for l in logits]
        denom = exps[0]
        for r in range(1, R):
            denom = denom + exps[r]
        inv = pl.reciprocal(denom, approx=True)                       # EUP slot
        scales = [(e * inv).astype(xdt) for e in exps]
    else:
        scales = [pl.reciprocal(1.0 + jnp.exp(-a), approx=True).astype(xdt)]

    # --- 5) attention-weighted sum of the radix splits, accumulated straight into
    #        o_ref (scales broadcast along lanes; no tile-sized temporary kept live).
    o_ref[...] = (scales[0][:, :, None] * split(0)).astype(o_ref.dtype)
    for r in range(1, R):
        o_ref[...] += (scales[r][:, :, None] * split(r)).astype(o_ref.dtype)


def _pick_vmem_limit_bytes():
    """Generation-aware scoped-VMEM request: ~60% of physical, <= 80 MiB
    (~38 MiB on v7x's 64 MiB, ~76 MiB on v5e/v6e's 128 MiB)."""
    try:
        cap = int(pltpu.get_tpu_info().vmem_capacity_bytes)
    except Exception:
        cap = 64 * 1024 * 1024
    return int(min((cap * 3) // 5, 80 * 1024 * 1024))


def _pick_block_batch(batch, radix, channels, hw, itemsize):
    """Batches per grid step: ~4 MiB x block, and at least min(batch, 4) grid steps
    so both v7x TensorCores (and the DMA pipeline) always have work."""
    per_batch_x = radix * channels * hw * itemsize
    nb = max(1, (4 * 1024 * 1024) // max(per_batch_x, 1))
    nb = min(nb, max(1, batch // min(batch, 4)))                      # >= min(B,4) steps
    nb = min(nb, batch)
    while batch % nb:                                                 # largest divisor <= target
        nb -= 1
    return nb


def splat_forward(x_nchw, w1k, b1k, w2k, b2k, *, radix):
    """x_nchw: (B, radix*channels, H, W) -> (B, channels, H, W)."""
    B, RC_in, H, W = x_nchw.shape
    C = RC_in // radix
    IC = w1k.shape[1]
    RC = w2k.shape[1]
    HW = H * W

    # Free (no-copy) reshape: NCHW -> (B, radix, C, HW). Radix is a leading block dim,
    # channels sit on sublanes, spatial on lanes.  No HBM transpose anywhere.
    x = x_nchw.reshape(B, radix, C, HW)

    # Weights in the input dtype (bf16 inference halves weight VMEM / DMA; f32 stays
    # exact for validation).  Biases stay f32 (added to f32 MXU accumulations).
    w1k = w1k.astype(x_nchw.dtype)
    w2k = w2k.astype(x_nchw.dtype)

    vmem_limit = _pick_vmem_limit_bytes()
    itemsize = jnp.dtype(x_nchw.dtype).itemsize
    NB = _pick_block_batch(B, radix, C, HW, itemsize)

    kernel = functools.partial(_splat_kernel, radix=radix, channels=C, hw=HW)
    out = pl.pallas_call(
        kernel,
        out_shape=jax.ShapeDtypeStruct((B, C, HW), x_nchw.dtype),
        grid_spec=pltpu.PrefetchScalarGridSpec(
            num_scalar_prefetch=0,
            grid=(B // NB,),
            in_specs=[
                pl.BlockSpec((NB, radix, C, HW), lambda b: (b, 0, 0, 0)),  # x slab
                pl.BlockSpec((C, IC), lambda b: (0, 0)),                   # fc1 (BN folded)
                pl.BlockSpec((1, IC), lambda b: (0, 0)),                   # fc1 bias
                pl.BlockSpec((IC, RC), lambda b: (0, 0)),                  # fc2 (radix-major)
                pl.BlockSpec((1, RC), lambda b: (0, 0)),                   # fc2 bias
            ],
            out_specs=pl.BlockSpec((NB, C, HW), lambda b: (b, 0, 0)),
        ),
        compiler_params=pltpu.CompilerParams(
            dimension_semantics=("parallel",),
            vmem_limit_bytes=vmem_limit,
        ),
    )(x, w1k, b1k, w2k, b2k)

    # Free reshape back to NCHW (no transpose).
    return out.reshape(B, C, H, W)


def init_params(key, channels, radix, cardinality, reduction_factor=4):
    """Deterministic synthetic parameters with the exact shapes Splat.__init__ implies."""
    C, card = channels, cardinality
    IC = max(channels * radix // reduction_factor, 32)
    Cg, ICg = C // card, IC // card
    OC2 = channels * radix
    OC2g = OC2 // card
    k = jax.random.split(key, 8)
    return dict(
        w1=0.1 * jax.random.normal(k[0], (card, ICg, Cg), jnp.float32),    # fc1 grouped weight
        b1=0.1 * jax.random.normal(k[1], (IC,), jnp.float32),
        gamma=1.0 + 0.1 * jax.random.normal(k[2], (IC,), jnp.float32),     # bn1
        beta=0.1 * jax.random.normal(k[3], (IC,), jnp.float32),
        rmean=0.1 * jax.random.normal(k[4], (IC,), jnp.float32),
        rvar=1.0 + 0.5 * jnp.abs(jax.random.normal(k[5], (IC,), jnp.float32)),
        w2=0.1 * jax.random.normal(k[6], (card, OC2g, ICg), jnp.float32),  # fc2 grouped weight
        b2=0.1 * jax.random.normal(k[7], (OC2,), jnp.float32),
    )


def fold_params(p, channels, radix, cardinality, eps=1e-5):
    """Block-diagonal expansion, eval-mode BN folding, fc2 radix-major permutation,
    transposed to the kernel's right-multiplication layout."""
    C, card = channels, cardinality
    IC = p["b1"].shape[0]
    Cg, ICg = C // card, IC // card
    RC = C * radix
    OC2g = RC // card

    w1d = jnp.zeros((IC, C), jnp.float32)
    w2d = jnp.zeros((RC, IC), jnp.float32)
    for g in range(card):
        w1d = w1d.at[g * ICg:(g + 1) * ICg, g * Cg:(g + 1) * Cg].set(p["w1"][g])
        w2d = w2d.at[g * OC2g:(g + 1) * OC2g, g * ICg:(g + 1) * ICg].set(p["w2"][g])

    # fold eval-mode BatchNorm into fc1
    scale = p["gamma"] / jnp.sqrt(p["rvar"] + eps)
    w1f = w1d * scale[:, None]
    b1f = scale * (p["b1"] - p["rmean"]) + p["beta"]

    # permute fc2 output rows (group, radix, cg) -> radix-major (radix, group, cg),
    # matching the transpose inside rSoftMax so the kernel slices by radix block.
    w2p = w2d.reshape(card, radix, Cg, IC).transpose(1, 0, 2, 3).reshape(RC, IC)
    b2p = p["b2"].reshape(card, radix, Cg).transpose(1, 0, 2).reshape(RC)

    # kernel does gap @ W1 and h @ W2 -> transpose; biases as (1, N) rows.
    return w1f.T, b1f[None, :], w2p.T, b2p[None, :]


def splat_reference(x, p, channels, radix, cardinality, eps=1e-5):
    """Pure-JAX mirror of the PyTorch forward (eval-mode BN) for validation."""
    B, RC, H, W = x.shape
    C, card = channels, cardinality
    Cg = C // card
    IC = p["b1"].shape[0]
    ICg = IC // card

    splits = [x[:, r * C:(r + 1) * C] for r in range(radix)]
    gap = sum(splits) if radix > 1 else x
    gap = gap.mean(axis=(2, 3))                                          # (B, C)

    y = jnp.einsum("gok,bgk->bgo", p["w1"], gap.reshape(B, card, Cg)).reshape(B, IC) + p["b1"]
    y = (y - p["rmean"]) / jnp.sqrt(p["rvar"] + eps) * p["gamma"] + p["beta"]
    y = jnp.maximum(y, 0.0)
    a = jnp.einsum("gok,bgk->bgo", p["w2"], y.reshape(B, card, ICg)).reshape(B, RC) + p["b2"]

    if radix > 1:
        a = a.reshape(B, card, radix, Cg).transpose(0, 2, 1, 3)
        atten = jax.nn.softmax(a, axis=1).reshape(B, RC)
    else:
        atten = jax.nn.sigmoid(a)
    atten = atten[:, :, None, None]

    if radix > 1:
        out = sum(atten[:, r * C:(r + 1) * C] * splits[r] for r in range(radix))
    else:
        out = atten * x
    return out


if __name__ == "__main__":
    # Small config consistent with the module: channels=16, radix=2, cardinality=2
    #  -> input has channels*radix = 32 channels, inter_channels = max(32//4, 32) = 32.
    batch, channels, radix, cardinality = 2, 16, 2, 2
    H = W = 8

    key = jax.random.PRNGKey(0)
    kx, kp = jax.random.split(key)
    x = jax.random.normal(kx, (batch, channels * radix, H, W), jnp.float32)

    params = init_params(kp, channels, radix, cardinality)
    w1k, b1k, w2k, b2k = fold_params(params, channels, radix, cardinality)

    out = splat_forward(x, w1k, b1k, w2k, b2k, radix=radix)
    out = jax.block_until_ready(out)

    ref = jax.block_until_ready(splat_reference(x, params, channels, radix, cardinality))

    assert out.shape == (batch, channels, H, W), out.shape
    assert jnp.allclose(out, ref, atol=1e-2, rtol=1e-2), float(jnp.max(jnp.abs(out - ref)))
    print("KERNEL_OK")
</pallas_src>

<mosaic_0001>
module attributes {stable_mosaic.version = 11 : i64} {
  func.func @_splat_kernel(%arg0: i32, %arg1: memref<1x2x16x64xf32, #tpu.memory_space<vmem>>, %arg2: memref<16x32xf32, #tpu.memory_space<vmem>>, %arg3: memref<1x32xf32, #tpu.memory_space<vmem>>, %arg4: memref<32x32xf32, #tpu.memory_space<vmem>>, %arg5: memref<1x32xf32, #tpu.memory_space<vmem>>, %arg6: memref<1x16x64xf32, #tpu.memory_space<vmem>>) attributes {dimension_semantics = [#tpu.dimension_semantics<parallel>], iteration_bounds = array<i64: 2>, scalar_prefetch = 0 : i64, scratch_operands = 0 : i64, tpu.core_type = #tpu.core_type<tc>, window_params = [{transform_indices = @transform_0, window_bounds = array<i64: 1, 2, 16, 64>}, {pipeline_mode = #tpu.pipeline_mode<synchronous>, transform_indices = @transform_1, window_bounds = array<i64: 16, 32>}, {pipeline_mode = #tpu.pipeline_mode<synchronous>, transform_indices = @transform_2, window_bounds = array<i64: 1, 32>}, {pipeline_mode = #tpu.pipeline_mode<synchronous>, transform_indices = @transform_3, window_bounds = array<i64: 32, 32>}, {pipeline_mode = #tpu.pipeline_mode<synchronous>, transform_indices = @transform_4, window_bounds = array<i64: 1, 32>}, {transform_indices = @transform_5, window_bounds = array<i64: 1, 16, 64>}]} {
    %c0 = arith.constant 0 : index
    %c0_0 = arith.constant 0 : index
    %c0_1 = arith.constant 0 : index
    %c0_2 = arith.constant 0 : index
    %0 = vector.load %arg1[%c0, %c0_0, %c0_1, %c0_2] : memref<1x2x16x64xf32, #tpu.memory_space<vmem>>, vector<1x1x16x64xf32>
    %1 = vector.shape_cast %0 : vector<1x1x16x64xf32> to vector<1x16x64xf32>
    %cst = arith.constant dense<0.000000e+00> : vector<1x16xf32>
    %2 = vector.multi_reduction <add>, %1, %cst [2] : vector<1x16x64xf32> to vector<1x16xf32>
    %c0_3 = arith.constant 0 : index
    %c1 = arith.constant 1 : index
    %c0_4 = arith.constant 0 : index
    %c0_5 = arith.constant 0 : index
    %3 = vector.load %arg1[%c0_3, %c1, %c0_4, %c0_5] : memref<1x2x16x64xf32, #tpu.memory_space<vmem>>, vector<1x1x16x64xf32>
    %4 = vector.shape_cast %3 : vector<1x1x16x64xf32> to vector<1x16x64xf32>
    %cst_6 = arith.constant dense<0.000000e+00> : vector<1x16xf32>
    %5 = vector.multi_reduction <add>, %4, %cst_6 [2] : vector<1x16x64xf32> to vector<1x16xf32>
    %6 = arith.addf %2, %5 : vector<1x16xf32>
    %cst_7 = arith.constant 1.562500e-02 : f32
    %7 = vector.broadcast %cst_7 : f32 to vector<1x16xf32>
    %8 = arith.mulf %6, %7 : vector<1x16xf32>
    %c0_8 = arith.constant 0 : index
    %c0_9 = arith.constant 0 : index
    %9 = vector.load %arg2[%c0_8, %c0_9] : memref<16x32xf32, #tpu.memory_space<vmem>>, vector<16x32xf32>
    %cst_10 = arith.constant dense<0.000000e+00> : vector<1x32xf32>
    %10 = tpu.matmul %8, %9, %cst_10 {dimension_numbers = #tpu.dot_dimension_numbers<[1], [0], [0], [1], [0, 0, 1, 1], [], []>} : vector<1x16xf32>, vector<16x32xf32>, vector<1x32xf32> -> vector<1x32xf32>
    %c0_11 = arith.constant 0 : index
    %c0_12 = arith.constant 0 : index
    %11 = vector.load %arg3[%c0_11, %c0_12] : memref<1x32xf32, #tpu.memory_space<vmem>>, vector<1x32xf32>
    %12 = arith.addf %10, %11 : vector<1x32xf32>
    %cst_13 = arith.constant 0.000000e+00 : f32
    %13 = vector.broadcast %cst_13 : f32 to vector<1x32xf32>
    %14 = arith.maximumf %12, %13 : vector<1x32xf32>
    %c0_14 = arith.constant 0 : index
    %c0_15 = arith.constant 0 : index
    %15 = vector.load %arg4[%c0_14, %c0_15] : memref<32x32xf32, #tpu.memory_space<vmem>>, vector<32x32xf32>
    %cst_16 = arith.constant dense<0.000000e+00> : vector<1x32xf32>
    %16 = tpu.matmul %14, %15, %cst_16 {dimension_numbers = #tpu.dot_dimension_numbers<[1], [0], [0], [1], [0, 0, 1, 1], [], []>} : vector<1x32xf32>, vector<32x32xf32>, vector<1x32xf32> -> vector<1x32xf32>
    %c0_17 = arith.constant 0 : index
    %c0_18 = arith.constant 0 : index
    %17 = vector.load %arg5[%c0_17, %c0_18] : memref<1x32xf32, #tpu.memory_space<vmem>>, vector<1x32xf32>
    %18 = arith.addf %16, %17 : vector<1x32xf32>
    %19 = vector.extract_strided_slice %18 {offsets = [0, 0], sizes = [1, 16], strides = [1, 1]} : vector<1x32xf32> to vector<1x16xf32>
    %20 = vector.extract_strided_slice %18 {offsets = [0, 16], sizes = [1, 16], strides = [1, 1]} : vector<1x32xf32> to vector<1x16xf32>
    %21 = arith.maximumf %19, %20 : vector<1x16xf32>
    %22 = arith.subf %19, %21 : vector<1x16xf32>
    %23 = math.exp %22 : vector<1x16xf32>
    %24 = arith.subf %20, %21 : vector<1x16xf32>
    %25 = math.exp %24 : vector<1x16xf32>
    %26 = arith.addf %23, %25 : vector<1x16xf32>
    %27 = tpu.reciprocal %26 {approx = true} : vector<1x16xf32> -> vector<1x16xf32>
    %28 = arith.mulf %23, %27 : vector<1x16xf32>
    %29 = arith.mulf %25, %27 : vector<1x16xf32>
    %30 = vector.shape_cast %28 : vector<1x16xf32> to vector<1x16x1xf32>
    %c0_19 = arith.constant 0 : index
    %c0_20 = arith.constant 0 : index
    %c0_21 = arith.constant 0 : index
    %c0_22 = arith.constant 0 : index
    %31 = vector.load %arg1[%c0_19, %c0_20, %c0_21, %c0_22] : memref<1x2x16x64xf32, #tpu.memory_space<vmem>>, vector<1x1x16x64xf32>
    %32 = vector.shape_cast %31 : vector<1x1x16x64xf32> to vector<1x16x64xf32>
    %33 = vector.broadcast %30 : vector<1x16x1xf32> to vector<1x16x64xf32>
    %34 = arith.mulf %33, %32 : vector<1x16x64xf32>
    %c0_23 = arith.constant 0 : index
    %c0_24 = arith.constant 0 : index
    %c0_25 = arith.constant 0 : index
    %35 = vector.load %arg6[%c0_23, %c0_24, %c0_25] : memref<1x16x64xf32, #tpu.memory_space<vmem>>, vector<1x16x64xf32>
    tpu.vector_store %arg6[%c0_23, %c0_24, %c0_25], %34 {strides = array<i32>} : memref<1x16x64xf32, #tpu.memory_space<vmem>>, vector<1x16x64xf32>,
    %c0_26 = arith.constant 0 : index
    %c0_27 = arith.constant 0 : index
    %c0_28 = arith.constant 0 : index
    %36 = vector.load %arg6[%c0_26, %c0_27, %c0_28] : memref<1x16x64xf32, #tpu.memory_space<vmem>>, vector<1x16x64xf32>
    %37 = vector.shape_cast %29 : vector<1x16xf32> to vector<1x16x1xf32>
    %c0_29 = arith.constant 0 : index
    %c1_30 = arith.constant 1 : index
    %c0_31 = arith.constant 0 : index
    %c0_32 = arith.constant 0 : index
    %38 = vector.load %arg1[%c0_29, %c1_30, %c0_31, %c0_32] : memref<1x2x16x64xf32, #tpu.memory_space<vmem>>, vector<1x1x16x64xf32>
    %39 = vector.shape_cast %38 : vector<1x1x16x64xf32> to vector<1x16x64xf32>
    %40 = vector.broadcast %37 : vector<1x16x1xf32> to vector<1x16x64xf32>
    %41 = arith.mulf %40, %39 : vector<1x16x64xf32>
    %42 = arith.addf %36, %41 : vector<1x16x64xf32>
    %c0_33 = arith.constant 0 : index
    %c0_34 = arith.constant 0 : index
    %c0_35 = arith.constant 0 : index
    %43 = vector.load %arg6[%c0_33, %c0_34, %c0_35] : memref<1x16x64xf32, #tpu.memory_space<vmem>>, vector<1x16x64xf32>
    tpu.vector_store %arg6[%c0_33, %c0_34, %c0_35], %42 {strides = array<i32>} : memref<1x16x64xf32, #tpu.memory_space<vmem>>, vector<1x16x64xf32>,
    return
  }
  func.func @transform_0(%arg0: i32) -> (i32, i32, i32, i32) {
    %c0_i32 = arith.constant 0 : i32
    %c0_i32_0 = arith.constant 0 : i32
    %c0_i32_1 = arith.constant 0 : i32
    %c0_i32_2 = arith.constant 0 : i32
    return %arg0, %c0_i32, %c0_i32_0, %c0_i32_1 : i32, i32, i32, i32
  }
  func.func @transform_1(%arg0: i32) -> (i32, i32) {
    %c0_i32 = arith.constant 0 : i32
    %c0_i32_0 = arith.constant 0 : i32
    %c0_i32_1 = arith.constant 0 : i32
    return %c0_i32, %c0_i32_0 : i32, i32
  }
  func.func @transform_2(%arg0: i32) -> (i32, i32) {
    %c0_i32 = arith.constant 0 : i32
    %c0_i32_0 = arith.constant 0 : i32
    %c0_i32_1 = arith.constant 0 : i32
    return %c0_i32, %c0_i32_0 : i32, i32
  }
  func.func @transform_3(%arg0: i32) -> (i32, i32) {
    %c0_i32 = arith.constant 0 : i32
    %c0_i32_0 = arith.constant 0 : i32
    %c0_i32_1 = arith.constant 0 : i32
    return %c0_i32, %c0_i32_0 : i32, i32
  }
  func.func @transform_4(%arg0: i32) -> (i32, i32) {
    %c0_i32 = arith.constant 0 : i32
    %c0_i32_0 = arith.constant 0 : i32
    %c0_i32_1 = arith.constant 0 : i32
    return %c0_i32, %c0_i32_0 : i32, i32
  }
  func.func @transform_5(%arg0: i32) -> (i32, i32, i32) {
    %c0_i32 = arith.constant 0 : i32
    %c0_i32_0 = arith.constant 0 : i32
    %c0_i32_1 = arith.constant 0 : i32
    return %arg0, %c0_i32, %c0_i32_0 : i32, i32, i32
  }
}

</mosaic_0001>

<llo_original>
// kernel: tpu_custom_call.1
$region0: #{tpu_custom_call.1}
  #allocation0 [shape = 'u32[]', space=smem, size = 0x4, offset = 0x4, fixed_abs, tag = 'smem constant byte address 0x4 - core index']
  #allocation1 [shape = 'u32[144,128]{1,0:T(1,128)}', space=vmem, size = 0x12000, scoped, tag = 'internal scratch']
  %s0 = inlined_call_operand.hbm [shape: f32[2,2,16,64], index: 0, kind: input, shape index: {}]
  %s1 = inlined_call_operand.hbm [shape: f32[16,32], index: 1, kind: input, shape index: {}]
  %s2 = inlined_call_operand.vmem [shape: f32[1,32], index: 2, kind: input, shape index: {}]
  %s3 = inlined_call_operand.hbm [shape: f32[32,32], index: 3, kind: input, shape index: {}]
  %s4 = inlined_call_operand.vmem [shape: f32[1,32], index: 4, kind: input, shape index: {}]
  %s5 = inlined_call_operand.hbm [shape: f32[2,16,64], index: 5, kind: output, shape index: {}]
  %s6 = sld [smem:[#allocation0]]
  $region65: #{tpu_custom_call.1} parent=0
    _
  %s8 = ssub.s32 1, %s6
  %s9 = scalar_select 0, %s8, %s6
  $region1: #{tpu_custom_call.1} parent=0
    #allocation2 [shape = 'u8[32768]{0}', space=vmem, size = 0x8000, scoped, tag = 'input window, operand 0']
    #allocation3 [shape = 's32[2]{0}', space=sflag, size = 0x8, scoped, tag = 'scoped memory for tpu_custom_call.1']
    #allocation4 [shape = 's32[2]{0}', space=sflag, size = 0x8, scoped, tag = 'scoped memory for tpu_custom_call.1']
    #allocation5 [shape = 'u8[8192]{0}', space=vmem, size = 0x2000, scoped, tag = 'input window, operand 1, single buffered']
    #allocation6 [shape = 's32[1]{0}', space=sflag, size = 0x4, scoped, tag = 'scoped memory for tpu_custom_call.1']
    #allocation7 [shape = 'u8[16384]{0}', space=vmem, size = 0x4000, scoped, tag = 'input window, operand 3, single buffered']
    #allocation8 [shape = 'u8[16384]{0}', space=vmem, size = 0x4000, scoped, tag = 'output window, operand 0']
    %10 = vsyncpa [#allocation3], 0
    %s11 = scalar_lea.sflag [#allocation3], 1
    %12 = vsyncpa %s11, 0
    %13 = vsyncpa [#allocation6], 0
    %14 = vsyncpa [#allocation4], 0
    %s15 = scalar_lea.sflag [#allocation4], 1
    %16 = vsyncpa %s15, 0
    loop: start=0, step=1, limit=4
    $region2: #{tpu_custom_call.1} parent=1 // loop_pre_header
      _
    $region3: #{tpu_custom_call.1} parent=1 // loop_header
      %s18 = sphi 0, %s22
      %p19 = scmp.ge.s32.totalorder %s18, 4
      %s28 = sphi 0, %s30
      %s31 = sphi 0, %s28
      %s32 = sphi 0, %s31
      %s48 = sphi 0, %s32
      %s52 = sphi 0, %s52
      %s54 = sphi 0, %s52
      %s55 = sphi 0, %s54
      %s69 = sphi 0, %s55
      %s73 = sphi 0, %s73
      %s75 = sphi 0, %s73
      %s76 = sphi 0, %s75
      %s90 = sphi 0, %s76
      %s94 = sphi 0, %s94
      %s96 = sphi 0, %s94
      %s97 = sphi 0, %s96
      %s111 = sphi 0, %s97
      %s115 = sphi 0, %s115
      %s117 = sphi 0, %s115
      %s118 = sphi 0, %s117
      %s132 = sphi 0, %s118
      %s138 = sphi 0, %s140
      %s141 = sphi 0, %s138
      %s142 = sphi 0, %s141
      %s158 = sphi 0, %s142
    $region4: #{tpu_custom_call.1} parent=1 // loop_header_branch
      %21 = sbr.rel (%p19) target = $region8
    $region5: #{tpu_custom_call.1} parent=1 // loop_body
      %s23 = ssub.s32 %s18, 1
      %s24 = ssub.s32 %s18, 2
      %s25 = sadd.s32 %s18, 1
      %s26 = ssub.s32 %s18, %s25
      %p27 = scmp.eq.s32.totalorder %s26, 0
      %s29 = sadd.s32 %s28, 1
      %s30 = scalar_select %p27, %s28, %s29
      %p33 = pneg %p27
      %p34 = scmp.eq.s32.totalorder %s18, 1
      %p35 = por %p33, %p34
      %p36 = scmp.ne.s32.totalorder %s28, %s31
      %p37 = scmp.eq.s32.totalorder %s18, 0
      %p38 = por %p36, %p37
      %p39 = scmp.ne.s32.totalorder %s28, %s31
      %p40 = scmp.eq.s32.totalorder %s23, 1
      %p41 = por %p39, %p40
      %p42 = scmp.ne.s32.totalorder %s31, %s32
      %p43 = scmp.eq.s32.totalorder %s23, 0
      %p44 = por %p42, %p43
      %p45 = scmp.ne.s32.totalorder %s31, %s32
      %p46 = scmp.eq.s32.totalorder %s24, 1
      %p47 = por %p45, %p46
      %p49 = scmp.ne.s32.totalorder %s32, %s48
      %p50 = scmp.eq.s32.totalorder %s24, 0
      %p51 = por %p49, %p50
      %s53 = sadd.s32 %s52, 1
      %p56 = scmp.eq.s32.totalorder %s18, 1
      %p57 = scmp.ne.s32.totalorder %s52, %s54
      %p58 = scmp.eq.s32.totalorder %s18, 0
      %p59 = por %p57, %p58
      %p60 = scmp.ne.s32.totalorder %s52, %s54
      %p61 = scmp.eq.s32.totalorder %s23, 1
      %p62 = por %p60, %p61
      %p63 = scmp.ne.s32.totalorder %s54, %s55
      %p64 = scmp.eq.s32.totalorder %s23, 0
      %p65 = por %p63, %p64
      %p66 = scmp.ne.s32.totalorder %s54, %s55
      %p67 = scmp.eq.s32.totalorder %s24, 1
      %p68 = por %p66, %p67
      %p70 = scmp.ne.s32.totalorder %s55, %s69
      %p71 = scmp.eq.s32.totalorder %s24, 0
      %p72 = por %p70, %p71
      %s74 = sadd.s32 %s73, 1
      %p77 = scmp.eq.s32.totalorder %s18, 1
      %p78 = scmp.ne.s32.totalorder %s73, %s75
      %p79 = scmp.eq.s32.totalorder %s18, 0
      %p80 = por %p78, %p79
      %p81 = scmp.ne.s32.totalorder %s73, %s75
      %p82 = scmp.eq.s32.totalorder %s23, 1
      %p83 = por %p81, %p82
      %p84 = scmp.ne.s32.totalorder %s75, %s76
      %p85 = scmp.eq.s32.totalorder %s23, 0
      %p86 = por %p84, %p85
      %p87 = scmp.ne.s32.totalorder %s75, %s76
      %p88 = scmp.eq.s32.totalorder %s24, 1
      %p89 = por %p87, %p88
      %p91 = scmp.ne.s32.totalorder %s76, %s90
      %p92 = scmp.eq.s32.totalorder %s24, 0
      %p93 = por %p91, %p92
      %s95 = sadd.s32 %s94, 1
      %p98 = scmp.eq.s32.totalorder %s18, 1
      %p99 = scmp.ne.s32.totalorder %s94, %s96
      %p100 = scmp.eq.s32.totalorder %s18, 0
      %p101 = por %p99, %p100
      %p102 = scmp.ne.s32.totalorder %s94, %s96
      %p103 = scmp.eq.s32.totalorder %s23, 1
      %p104 = por %p102, %p103
      %p105 = scmp.ne.s32.totalorder %s96, %s97
      %p106 = scmp.eq.s32.totalorder %s23, 0
      %p107 = por %p105, %p106
      %p108 = scmp.ne.s32.totalorder %s96, %s97
      %p109 = scmp.eq.s32.totalorder %s24, 1
      %p110 = por %p108, %p109
      %p112 = scmp.ne.s32.totalorder %s97, %s111
      %p113 = scmp.eq.s32.totalorder %s24, 0
      %p114 = por %p112, %p113
      %s116 = sadd.s32 %s115, 1
      %p119 = scmp.eq.s32.totalorder %s18, 1
      %p120 = scmp.ne.s32.totalorder %s115, %s117
      %p121 = scmp.eq.s32.totalorder %s18, 0
      %p122 = por %p120, %p121
      %p123 = scmp.ne.s32.totalorder %s115, %s117
      %p124 = scmp.eq.s32.totalorder %s23, 1
      %p125 = por %p123, %p124
      %p126 = scmp.ne.s32.totalorder %s117, %s118
      %p127 = scmp.eq.s32.totalorder %s23, 0
      %p128 = por %p126, %p127
      %p129 = scmp.ne.s32.totalorder %s117, %s118
      %p130 = scmp.eq.s32.totalorder %s24, 1
      %p131 = por %p129, %p130
      %p133 = scmp.ne.s32.totalorder %s118, %s132
      %p134 = scmp.eq.s32.totalorder %s24, 0
      %p135 = por %p133, %p134
      %s136 = ssub.s32 %s18, %s25
      %p137 = scmp.eq.s32.totalorder %s136, 0
      %s139 = sadd.s32 %s138, 1
      %s140 = scalar_select %p137, %s138, %s139
      %p143 = pneg %p137
      %p144 = scmp.eq.s32.totalorder %s18, 1
      %p145 = por %p143, %p144
      %p146 = scmp.ne.s32.totalorder %s138, %s141
      %p147 = scmp.eq.s32.totalorder %s18, 0
      %p148 = por %p146, %p147
      %p149 = scmp.ne.s32.totalorder %s138, %s141
      %p150 = scmp.eq.s32.totalorder %s23, 1
      %p151 = por %p149, %p150
      %p152 = scmp.ne.s32.totalorder %s141, %s142
      %p153 = scmp.eq.s32.totalorder %s23, 0
      %p154 = por %p152, %p153
      %p155 = scmp.ne.s32.totalorder %s141, %s142
      %p156 = scmp.eq.s32.totalorder %s24, 1
      %p157 = por %p155, %p156
      %p159 = scmp.ne.s32.totalorder %s142, %s158
      %p160 = scmp.eq.s32.totalorder %s24, 0
      %p161 = por %p159, %p160
      %p162 = scmp.le.s32.totalorder 1, %s18
      %p163 = scmp.lt.s32.totalorder %s18, 3
      %p164 = pnand %p162, %p163
      %p165 = pneg %p164
      // Predicated region
      $region9: #{tpu_custom_call.1} parent=5 // pred_check
        _
      $region10: #{tpu_custom_call.1} parent=5 // pred_check_branch
        %167 = sbr.rel (%p164) target = $region12
      $region11: #{tpu_custom_call.1} parent=5 // pred_region
        %s168 = ssub.s32 %s18, 1
        // Predicated region
        $region13: #{tpu_custom_call.1} parent=11 // pred_check
          %p169 = pneg %p65
        $region14: #{tpu_custom_call.1} parent=11 // pred_check_branch
          %171 = sbr.rel (%p169) target = $region16
        $region15: #{tpu_custom_call.1} parent=11 // pred_region
          %s173 = ssub.s32 256, 256
          %174 = vsyncadd [#allocation6], %s173
          %s175 = sshll.u32 [#allocation5], 4
          %s176 = int_to_ptr.vmem [resolvable:$true] %s175
          %181 = dma.hbm_to_vmem [thread:$0]  %s1, 256, %s176, [#allocation6], 128, 128, 8
        $region16: #{tpu_custom_call.1} parent=11 // pred_fallthru
          _
        // Predicated region
        $region17: #{tpu_custom_call.1} parent=11 // pred_check
          %p182 = pneg %p86
        $region18: #{tpu_custom_call.1} parent=11 // pred_check_branch
          %184 = sbr.rel (%p182) target = $region20
        $region19: #{tpu_custom_call.1} parent=11 // pred_region
          _
        $region20: #{tpu_custom_call.1} parent=11 // pred_fallthru
          _
        // Predicated region
        $region21: #{tpu_custom_call.1} parent=11 // pred_check
          %p185 = pneg %p107
        $region22: #{tpu_custom_call.1} parent=11 // pred_check_branch
          %187 = sbr.rel (%p185) target = $region24
        $region23: #{tpu_custom_call.1} parent=11 // pred_region
          %s189 = ssub.s32 512, 512
          %190 = vsyncadd [#allocation6], %s189
          %s191 = sshll.u32 [#allocation7], 4
          %s192 = int_to_ptr.vmem [resolvable:$true] %s191
          %197 = dma.hbm_to_vmem [thread:$0]  %s3, 512, %s192, [#allocation6], 128, 128, 8
        $region24: #{tpu_custom_call.1} parent=11 // pred_fallthru
          _
        // Predicated region
        $region25: #{tpu_custom_call.1} parent=11 // pred_check
          %p198 = pneg %p128
        $region26: #{tpu_custom_call.1} parent=11 // pred_check_branch
          %200 = sbr.rel (%p198) target = $region28
        $region27: #{tpu_custom_call.1} parent=11 // pred_region
          _
        $region28: #{tpu_custom_call.1} parent=11 // pred_fallthru
          _
      $region12: #{tpu_custom_call.1} parent=5 // pred_fallthru
        _
      %p201 = scmp.lt.s32.totalorder %s18, 2
      // Predicated region
      $region29: #{tpu_custom_call.1} parent=5 // pred_check
        %p202 = pneg %p201
      $region30: #{tpu_custom_call.1} parent=5 // pred_check_branch
        %204 = sbr.rel (%p202) target = $region32
      $region31: #{tpu_custom_call.1} parent=5 // pred_region
        // Predicated region
        $region33: #{tpu_custom_call.1} parent=31 // pred_check
          %p205 = pneg %p38
        $region34: #{tpu_custom_call.1} parent=31 // pred_check_branch
          %207 = sbr.rel (%p205) target = $region36
        $region35: #{tpu_custom_call.1} parent=31 // pred_region
          %s208 = sand.u32 %s28, 1
          %s209 = scalar_lea.sflag [#allocation3], %s208
          %s210 = sand.u32 %s28, 1
          %s211 = smul.addr %s210, 32
          %s212 = scalar_lea.vmem [#allocation2], %s211
          %s214 = ssub.s32 512, 512
          %215 = vsyncadd %s209, %s214
          %s216 = smul.addr %s18, 4
          %s217 = smul.addr %s216, 128
          %s218 = scalar_lea.hbm %s0, %s217
          %s219 = sshll.u32 %s212, 4
          %s220 = int_to_ptr.vmem [resolvable:$true] %s219
          %225 = dma.hbm_to_vmem [thread:$0]  %s218, 512, %s220, %s209, 128, 128, 8
        $region36: #{tpu_custom_call.1} parent=31 // pred_fallthru
          _
      $region32: #{tpu_custom_call.1} parent=5 // pred_fallthru
        _
      %p226 = scmp.le.s32.totalorder 1, %s18
      %p227 = scmp.lt.s32.totalorder %s18, 3
      %p228 = pnand %p226, %p227
      %p229 = pneg %p228
      // Predicated region
      $region37: #{tpu_custom_call.1} parent=5 // pred_check
        _
      $region38: #{tpu_custom_call.1} parent=5 // pred_check_branch
        %231 = sbr.rel (%p228) target = $region40
      $region39: #{tpu_custom_call.1} parent=5 // pred_region
        %s232 = ssub.s32 %s18, 1
        %s233 = sand.u32 %s31, 1
        %s234 = scalar_lea.sflag [#allocation3], %s233
        %s235 = sand.u32 %s31, 1
        %s236 = smul.addr %s235, 32
        %s237 = scalar_lea.vmem [#allocation2], %s236
        // Predicated region
        $region41: #{tpu_custom_call.1} parent=39 // pred_check
          %p238 = pneg %p44
        $region42: #{tpu_custom_call.1} parent=39 // pred_check_branch
          %240 = sbr.rel (%p238) target = $region44
        $region43: #{tpu_custom_call.1} parent=39 // pred_region
          %241 = dma.done %s234, 512
        $region44: #{tpu_custom_call.1} parent=39 // pred_fallthru
          _
        // Predicated region
        $region45: #{tpu_custom_call.1} parent=39 // pred_check
          %p242 = pneg %p65
        $region46: #{tpu_custom_call.1} parent=39 // pred_check_branch
          %244 = sbr.rel (%p242) target = $region48
        $region47: #{tpu_custom_call.1} parent=39 // pred_region
          %245 = dma.done [#allocation6], 256
        $region48: #{tpu_custom_call.1} parent=39 // pred_fallthru
          _
        // Predicated region
        $region49: #{tpu_custom_call.1} parent=39 // pred_check
          %p246 = pneg %p107
        $region50: #{tpu_custom_call.1} parent=39 // pred_check_branch
          %248 = sbr.rel (%p246) target = $region52
        $region51: #{tpu_custom_call.1} parent=39 // pred_region
          %249 = dma.done [#allocation6], 512
        $region52: #{tpu_custom_call.1} parent=39 // pred_fallthru
          _
        %s250 = sand.u32 %s31, 1
        %s251 = scalar_lea.sflag [#allocation3], %s250
        %s252 = sand.u32 %s31, 1
        %s253 = smul.addr %s252, 32
        %s254 = scalar_lea.vmem [#allocation2], %s253
        %p255 = pneg %p44
        %p256 = pneg %p41
        %p257 = pneg %p65
        %p258 = pneg %p62
        %p259 = pneg %p86
        %p260 = pneg %p83
        %p261 = pneg %p107
        %p262 = pneg %p104
        %p263 = pneg %p128
        %p264 = pneg %p125
        %p265 = pneg %p154
        %p266 = pneg %p151
        %s267 = sand.u32 %s141, 1
        %s268 = scalar_lea.sflag [#allocation4], %s267
        %s269 = sand.u32 %s141, 1
        %s270 = smul.addr %s269, 16
        %s271 = scalar_lea.vmem [#allocation8], %s270
        %v272 = vld [vmem:[%s237] sm:$0xff]
        %v273 = vld [vmem:[%s237 + $0x8] sm:$0xff]
        %vm274 = vcmask 523264
        %v275 = vsel %vm274, %v272, 0.0
        %276 = vadd.xlane.f32.xlu0 %v275
        %v277 = vpop.xlane.xlu0 %276
        %v278 = vsel %vm274, %v273, 0.0
        %279 = vadd.xlane.f32.xlu0 %v278
        %v280 = vpop.xlane.xlu0 %279
        %s281 = scalar_lea.vmem %s237, 16 [#allocation2]
        %v282 = vld [vmem:[%s281] sm:$0xff]
        %v283 = vld [vmem:[%s281 + $0x8] sm:$0xff]
        %v284 = vsel %vm274, %v282, 0.0
        %285 = vadd.xlane.f32.xlu0 %v284
        %v286 = vpop.xlane.xlu0 %285
        %v287 = vsel %vm274, %v283, 0.0
        %288 = vadd.xlane.f32.xlu0 %v287
        %v289 = vpop.xlane.xlu0 %288
        %v290 = vadd.f32 %v277, %v286
        %v291 = vadd.f32 %v280, %v289
        %v292 = vmul.f32 %v290, 0.015625
        %v293 = vmul.f32 %v291, 0.015625
        %v294 = vld [vmem:[#allocation5] sm:$0xff]
        %v295 = vld [vmem:[#allocation5 + $0x8] sm:$0xff]
        %v296 = vld [vmem:[%s2] sm:$0x1]
        %v299 = vlaneseq
        %v300 = vand.u32 %v299, 127
        %v301 = vlaneseq
        %v302 = vshrl.u32 %v301, 7
        %v303 = vsub.s32 %v300, %v302
        %v304 = vrot.slane %v292, %v303
        %v305 = vadd.s32 %v300, 4294967288
        %v306 = vlaneseq
        %v307 = vshrl.u32 %v306, 7
        %v308 = vsub.s32 %v305, %v307
        %v309 = vrot.slane %v293, %v308
        %vm310 = vcmask 130112
        %v311 = vsel %vm310, %v309, %v304
        %vm312 = vcmask 130048
        %v313 = vsel %vm312, %v311, 0
        %315 = vmatprep.subr.mxu0 0.0
        %316 = vmatpush1.msra.mxu0 %v294
        %317 = vmatprep.subr.mxu0 0.0
        %318 = vmatpush1.msra.mxu0 %v295
        %319 = vmatprep.subr.mxu0 0.0
        %320 = vmatpush1.msra.mxu0 0.0
        %321 = vmatprep.subr.mxu0 0.0
        %322 = vmatpush1.msra.mxu0 0.0
        %323 = vmatprep.subr.mxu0 0.0
        %324 = vmatpush1.msra.mxu0 0.0
        %325 = vmatprep.subr.mxu0 0.0
        %326 = vmatpush1.msra.mxu0 0.0
        %327 = vmatprep.subr.mxu0 0.0
        %328 = vmatpush1.msra.mxu0 0.0
        %329 = vmatprep.subr.mxu0 0.0
        %330 = vmatpush1.msra.mxu0 0.0
        %331 = vmatprep.subr.mxu0 0.0
        %332 = vmatpush1.msra.mxu0 0.0
        %333 = vmatprep.subr.mxu0 0.0
        %334 = vmatpush1.msra.mxu0 0.0
        %335 = vmatprep.subr.mxu0 0.0
        %336 = vmatpush1.msra.mxu0 0.0
        %337 = vmatprep.subr.mxu0 0.0
        %338 = vmatpush1.msra.mxu0 0.0
        %339 = vmatprep.subr.mxu0 0.0
        %340 = vmatpush1.msra.mxu0 0.0
        %341 = vmatprep.subr.mxu0 0.0
        %342 = vmatpush1.msra.mxu0 0.0
        %343 = vmatprep.subr.mxu0 0.0
        %344 = vmatpush1.msra.mxu0 0.0
        %345 = vmatprep.subr.mxu0 0.0
        %346 = vmatpush1.msra.mxu0 0.0
        %347 = vmatprep.subr.mxu0 0.0
        %348 = vmatpush1.msra.mxu0 0.0
        %349 = vmatprep.subr.mxu0 0.0
        %350 = vmatpush1.msra.mxu0 0.0
        %351 = vmatprep.subr.mxu0 0.0
        %352 = vmatpush1.msra.mxu0 0.0
        %353 = vmatprep.subr.mxu0 0.0
        %354 = vmatpush1.msra.mxu0 0.0
        %355 = vmatprep.subr.mxu0 0.0
        %356 = vmatpush1.msra.mxu0 0.0
        %357 = vmatprep.subr.mxu0 0.0
        %358 = vmatpush1.msra.mxu0 0.0
        %359 = vmatprep.subr.mxu0 0.0
        %360 = vmatpush1.msra.mxu0 0.0
        %361 = vmatprep.subr.mxu0 0.0
        %362 = vmatpush1.msra.mxu0 0.0
        %363 = vmatprep.subr.mxu0 0.0
        %364 = vmatpush1.msra.mxu0 0.0
        %365 = vmatprep.subr.mxu0 0.0
        %366 = vmatpush1.msra.mxu0 0.0
        %367 = vmatprep.subr.mxu0 0.0
        %368 = vmatpush1.msra.mxu0 0.0
        %369 = vmatprep.subr.mxu0 0.0
        %370 = vmatpush1.msra.mxu0 0.0
        %371 = vmatprep.subr.mxu0 0.0
        %372 = vmatpush1.msra.mxu0 0.0
        %373 = vmatprep.subr.mxu0 0.0
        %374 = vmatpush1.msra.mxu0 0.0
        %375 = vmatprep.subr.mxu0 0.0
        %376 = vmatpush1.msra.mxu0 0.0
        %377 = vmatprep.subr.mxu0 0.0
        %378 = vmatpush1.msra.mxu0 0.0
        %379 = vmatprep.mubr.f32.mxu0 0.0
        %380 = vmatmul.mubr.f32.gmra.mrb[0].mxu0 %v313
        %v381 = vpop.f32.mrb[0].mxu0
        %v382 = vadd.f32 %v296, %v381
        %v383 = vpop.f32.mrb[0].mxu0
        %384 = vdwg.mxu0
        %v385 = vmax.f32 %v382, 0.0
        %v386 = vld [vmem:[#allocation7] sm:$0xff]
        %v387 = vld [vmem:[#allocation7 + $0x8] sm:$0xff]
        %v388 = vld [vmem:[#allocation7 + $0x10] sm:$0xff]
        %v389 = vld [vmem:[#allocation7 + $0x18] sm:$0xff]
        %v390 = vld [vmem:[%s4] sm:$0x1]
        %vm391 = vcmask 261120
        %v393 = vsel %vm391, %v385, 0
        %395 = vmatprep.subr.mxu0 0.0
        %396 = vmatpush1.msra.mxu0 %v386
        %397 = vmatprep.subr.mxu0 0.0
        %398 = vmatpush1.msra.mxu0 %v387
        %399 = vmatprep.subr.mxu0 0.0
        %400 = vmatpush1.msra.mxu0 %v388
        %401 = vmatprep.subr.mxu0 0.0
        %402 = vmatpush1.msra.mxu0 %v389
        %403 = vmatprep.subr.mxu0 0.0
        %404 = vmatpush1.msra.mxu0 0.0
        %405 = vmatprep.subr.mxu0 0.0
        %406 = vmatpush1.msra.mxu0 0.0
        %407 = vmatprep.subr.mxu0 0.0
        %408 = vmatpush1.msra.mxu0 0.0
        %409 = vmatprep.subr.mxu0 0.0
        %410 = vmatpush1.msra.mxu0 0.0
        %411 = vmatprep.subr.mxu0 0.0
        %412 = vmatpush1.msra.mxu0 0.0
        %413 = vmatprep.subr.mxu0 0.0
        %414 = vmatpush1.msra.mxu0 0.0
        %415 = vmatprep.subr.mxu0 0.0
        %416 = vmatpush1.msra.mxu0 0.0
        %417 = vmatprep.subr.mxu0 0.0
        %418 = vmatpush1.msra.mxu0 0.0
        %419 = vmatprep.subr.mxu0 0.0
        %420 = vmatpush1.msra.mxu0 0.0
        %421 = vmatprep.subr.mxu0 0.0
        %422 = vmatpush1.msra.mxu0 0.0
        %423 = vmatprep.subr.mxu0 0.0
        %424 = vmatpush1.msra.mxu0 0.0
        %425 = vmatprep.subr.mxu0 0.0
        %426 = vmatpush1.msra.mxu0 0.0
        %427 = vmatprep.subr.mxu0 0.0
        %428 = vmatpush1.msra.mxu0 0.0
        %429 = vmatprep.subr.mxu0 0.0
        %430 = vmatpush1.msra.mxu0 0.0
        %431 = vmatprep.subr.mxu0 0.0
        %432 = vmatpush1.msra.mxu0 0.0
        %433 = vmatprep.subr.mxu0 0.0
        %434 = vmatpush1.msra.mxu0 0.0
        %435 = vmatprep.subr.mxu0 0.0
        %436 = vmatpush1.msra.mxu0 0.0
        %437 = vmatprep.subr.mxu0 0.0
        %438 = vmatpush1.msra.mxu0 0.0
        %439 = vmatprep.subr.mxu0 0.0
        %440 = vmatpush1.msra.mxu0 0.0
        %441 = vmatprep.subr.mxu0 0.0
        %442 = vmatpush1.msra.mxu0 0.0
        %443 = vmatprep.subr.mxu0 0.0
        %444 = vmatpush1.msra.mxu0 0.0
        %445 = vmatprep.subr.mxu0 0.0
        %446 = vmatpush1.msra.mxu0 0.0
        %447 = vmatprep.subr.mxu0 0.0
        %448 = vmatpush1.msra.mxu0 0.0
        %449 = vmatprep.subr.mxu0 0.0
        %450 = vmatpush1.msra.mxu0 0.0
        %451 = vmatprep.subr.mxu0 0.0
        %452 = vmatpush1.msra.mxu0 0.0
        %453 = vmatprep.subr.mxu0 0.0
        %454 = vmatpush1.msra.mxu0 0.0
        %455 = vmatprep.subr.mxu0 0.0
        %456 = vmatpush1.msra.mxu0 0.0
        %457 = vmatprep.subr.mxu0 0.0
        %458 = vmatpush1.msra.mxu0 0.0
        %459 = vmatprep.mubr.f32.mxu0 0.0
        %460 = vmatmul.mubr.f32.gmra.mrb[0].mxu0 %v393
        %v461 = vpop.f32.mrb[0].mxu0
        %v462 = vadd.f32 %v390, %v461
        %v463 = vpop.f32.mrb[0].mxu0
        %464 = vdwg.mxu0
        %466 = vrot.lane.b32.xlu0 %v462, 112
        %v467 = vpop.permute.xlu0 %466
        %v469 = vmax.f32 %v462, %v467
        %v470 = vsub.f32 %v462, %v469
        %v471 = vmul.f32 %v470, 1.442695
        %v472 = vpow.pop %v471
        %474 = vrot.lane.b32.xlu0 %v469, 16
        %v475 = vpop.permute.xlu0 %474
        %v477 = vsub.f32 %v462, %v475
        %v478 = vmul.f32 %v477, 1.442695
        %v479 = vpow.pop %v478
        %481 = vrot.lane.b32.xlu0 %v479, 112
        %v482 = vpop.permute.xlu0 %481
        %v484 = vadd.f32 %v472, %v482
        %v485 = vrcp.pop %v484
        %v486 = vmul.f32 %v472, %v485
        %488 = vrot.lane.b32.xlu0 %v485, 16
        %v489 = vpop.permute.xlu0 %488
        %v491 = vmul.f32 %v479, %v489
        %v492 = vlaneseq
        %v493 = vshrl.u32 %v492, 7
        %v494 = vsub.s32 0, %v493
        %v495 = vrot.slane %v486, %v494
        %497 = vbcast.lane.b32.xlu0 %v495, 256
        %v498 = vpop.permute.xlu0 %497
        %s500 = sor.u32 256, 8
        %501 = vbcast.lane.b32.xlu0 %v495, %s500
        %v502 = vpop.permute.xlu0 %501
        %v503 = vmul.f32 %v498, %v272
        %v504 = vmul.f32 %v502, %v273
        %505 = vst.msk [vmem:[%s271] sm:$0xff] %vm274, %v503
        %506 = vst.msk [vmem:[%s271 + $0x8] sm:$0xff] %vm274, %v504
        %v507 = vld [vmem:[%s271] sm:$0xff]
        %v508 = vld [vmem:[%s271 + $0x8] sm:$0xff]
        %v509 = vlaneseq
        %v510 = vshrl.u32 %v509, 7
        %v511 = vsub.s32 0, %v510
        %v512 = vrot.slane %v491, %v511
        %s514 = sor.u32 256, 16
        %515 = vbcast.lane.b32.xlu0 %v512, %s514
        %v516 = vpop.permute.xlu0 %515
        %s518 = sor.u32 256, 24
        %519 = vbcast.lane.b32.xlu0 %v512, %s518
        %v520 = vpop.permute.xlu0 %519
        %v521 = vld [vmem:[%s281] sm:$0xff]
        %v522 = vld [vmem:[%s281 + $0x8] sm:$0xff]
        %v523 = vmul.f32 %v516, %v521
        %v524 = vmul.f32 %v520, %v522
        %v525 = vadd.f32 %v507, %v523
        %v526 = vadd.f32 %v508, %v524
        %527 = vst.msk [vmem:[%s271] sm:$0xff] %vm274, %v525
        %528 = vst.msk [vmem:[%s271 + $0x8] sm:$0xff] %vm274, %v526
        %s529 = sand.u32 %s141, 1
        %s530 = scalar_lea.sflag [#allocation4], %s529
        %s531 = sand.u32 %s141, 1
        %s532 = smul.addr %s531, 16
        %s533 = scalar_lea.vmem [#allocation8], %s532
        // Predicated region
        $region53: #{tpu_custom_call.1} parent=39 // pred_check
          %p534 = pneg %p151
        $region54: #{tpu_custom_call.1} parent=39 // pred_check_branch
          %536 = sbr.rel (%p534) target = $region56
        $region55: #{tpu_custom_call.1} parent=39 // pred_region
          %s538 = ssub.s32 256, 256
          %539 = vsyncadd %s530, %s538
          %s540 = smul.addr %s23, 2
          %s541 = smul.addr %s540, 128
          %s542 = scalar_lea.hbm %s5, %s541
          %s543 = sshll.u32 %s533, 4
          %s544 = int_to_ptr.vmem [resolvable:$true] %s543
          %549 = dma.vmem_to_hbm [thread:$0]  %s544, 256, %s542, %s530, 128, 128, 8
        $region56: #{tpu_custom_call.1} parent=39 // pred_fallthru
          _
      $region40: #{tpu_custom_call.1} parent=5 // pred_fallthru
        _
      %p550 = scmp.le.s32.totalorder 2, %s18
      // Predicated region
      $region57: #{tpu_custom_call.1} parent=5 // pred_check
        %p551 = pneg %p550
      $region58: #{tpu_custom_call.1} parent=5 // pred_check_branch
        %553 = sbr.rel (%p551) target = $region60
      $region59: #{tpu_custom_call.1} parent=5 // pred_region
        %s554 = ssub.s32 %s18, 2
        // Predicated region
        $region61: #{tpu_custom_call.1} parent=59 // pred_check
          %p555 = pneg %p157
        $region62: #{tpu_custom_call.1} parent=59 // pred_check_branch
          %557 = sbr.rel (%p555) target = $region64
        $region63: #{tpu_custom_call.1} parent=59 // pred_region
          %s558 = sand.u32 %s142, 1
          %s559 = scalar_lea.sflag [#allocation4], %s558
          %s560 = sand.u32 %s142, 1
          %s561 = smul.addr %s560, 16
          %s562 = scalar_lea.vmem [#allocation8], %s561
          %563 = dma.done %s559, 256
        $region64: #{tpu_custom_call.1} parent=59 // pred_fallthru
          _
      $region60: #{tpu_custom_call.1} parent=5 // pred_fallthru
        _
    $region6: #{tpu_custom_call.1} parent=1 // loop_footer
      %s22 = sadd.s32 1, %s18
    $region7: #{tpu_custom_call.1} parent=1 // loop_footer_branch
      %17 = sbr.rel target = $region3
    $region8: #{tpu_custom_call.1} parent=1 // loop_exit
      _
    %564 = vsyncpa [#allocation3], 1
    %s565 = scalar_lea.sflag [#allocation3], 1
    %566 = vsyncpa %s565, 1
    %567 = vsyncpa [#allocation6], 1
    %568 = vsyncpa [#allocation4], 1
    %s569 = scalar_lea.sflag [#allocation4], 1
    %570 = vsyncpa %s569, 1

</llo_original>
